<compile_context>
chip_gen: v7x
topology: tpu7x:2x2x1
jax: 0.10.0
libtpu: 0.0.40
codegen_flags: <defaults>
</compile_context>

<pallas_src>
import functools

import jax
import jax.numpy as jnp
from jax.experimental import pallas as pl
from jax.experimental.pallas import tpu as pltpu

EPS = 1e-5
NEG_SLOPE = 0.2


def _stats_kernel(p_ref, w_ref, g_ref, b_ref, scale_ref, shift_ref,
                  sum_ref, ssq_ref, *, m_total):
    # p_ref: [1, K, TILE_S] bf16 patches^T   w_ref: [Cout, K] bf16
    # g_ref/b_ref: [Cout, 1] f32             scale_ref/shift_ref: [Cout, 1] f32 outputs
    # sum_ref/ssq_ref: [Cout, 1] f32 VMEM accumulators (persist across grid steps)
    n, s = pl.program_id(0), pl.program_id(1)

    @pl.when((n == 0) & (s == 0))
    def _init():
        sum_ref[...] = jnp.zeros_like(sum_ref)
        ssq_ref[...] = jnp.zeros_like(ssq_ref)
        scale_ref[...] = jnp.zeros_like(scale_ref)
        shift_ref[...] = jnp.zeros_like(shift_ref)

    # y^T tile: [Cout, TILE_S], bf16 operands, f32 accumulation on the MXU.
    y = jnp.dot(w_ref[...], p_ref[0], preferred_element_type=jnp.float32)
    sum_ref[...] += jnp.sum(y, axis=1, keepdims=True)
    ssq_ref[...] += jnp.sum(y * y, axis=1, keepdims=True)

    @pl.when((n == pl.num_programs(0) - 1) & (s == pl.num_programs(1) - 1))
    def _finalize():
        inv_m = 1.0 / float(m_total)
        mean = sum_ref[...] * inv_m
        var = jnp.maximum(ssq_ref[...] * inv_m - mean * mean, 0.0)  # biased variance
        scale = g_ref[...] * jax.lax.rsqrt(var + EPS)
        scale_ref[...] = scale
        shift_ref[...] = b_ref[...] - mean * scale


def _norm_kernel(p_ref, w_ref, scale_ref, shift_ref, o_ref):
    # Recompute conv tile, then one FMA + compare/select per element.
    y = jnp.dot(w_ref[...], p_ref[0], preferred_element_type=jnp.float32)  # [Cout, TILE_S]
    z = y * scale_ref[...] + shift_ref[...]
    o_ref[0] = jnp.where(z >= 0, z, NEG_SLOPE * z).astype(o_ref.dtype)


def _pick_tile_s(S):
    # Lane (last) dim of the tile: multiple of 128, or the full extent for small/odd sizes.
    if S % 128 != 0:
        return S
    for cand in (512, 256, 128):
        if S % cand == 0:
            return cand
    return S


@jax.jit
def conv4x4_lrelu(x, weight, gamma, beta):
    """x: [N, Cin, H, W] f32; weight: [Cout, Cin, 4, 4]; gamma/beta: [Cout] -> [N, Cout, H/2, W/2]."""
    N, Cin, H, W = x.shape
    Cout = weight.shape[0]
    Ho, Wo = H // 2, W // 2
    S = Ho * Wo
    M = N * S
    K = Cin * 16

    # --- glue: im2col built directly in [N, K, S] (patches^T) layout, bf16 MXU operands ---
    xp = jnp.pad(x, ((0, 0), (0, 0), (1, 1), (1, 1)))
    cols = [xp[:, :, kh:kh + 2 * Ho:2, kw:kw + 2 * Wo:2]
            for kh in range(4) for kw in range(4)]              # 16 x [N, Cin, Ho, Wo]
    patches = jnp.stack(cols, axis=2)                           # [N, Cin, 16, Ho, Wo]
    patches = patches.reshape(N, K, S).astype(jnp.bfloat16)     # K order = cin*16 + kh*4 + kw

    w2d = weight.reshape(Cout, K).astype(jnp.bfloat16)          # same K order, no transpose
    g2d = gamma.reshape(Cout, 1).astype(jnp.float32)
    b2d = beta.reshape(Cout, 1).astype(jnp.float32)

    tile_s = _pick_tile_s(S)
    grid = (N, S // tile_s)

    p_spec = pl.BlockSpec((1, K, tile_s), lambda n, s: (n, 0, s))
    w_spec = pl.BlockSpec((Cout, K), lambda n, s: (0, 0))
    c_spec = pl.BlockSpec((Cout, 1), lambda n, s: (0, 0))       # per-channel vectors

    bytes_p = patches.size * patches.dtype.itemsize
    bytes_w = w2d.size * w2d.dtype.itemsize
    flops = 2 * M * K * Cout
    vmem_limit = 32 * 1024 * 1024   # >= default on all of v5e/v6e/v7x, with headroom on v7x

    # ---- pass 1: conv matmul + per-channel stats -> folded (scale, shift) ----
    scale, shift = pl.pallas_call(
        functools.partial(_stats_kernel, m_total=M),
        out_shape=(jax.ShapeDtypeStruct((Cout, 1), jnp.float32),
                   jax.ShapeDtypeStruct((Cout, 1), jnp.float32)),
        grid_spec=pltpu.PrefetchScalarGridSpec(
            num_scalar_prefetch=0,
            grid=grid,
            in_specs=[p_spec, w_spec, c_spec, c_spec],
            out_specs=(c_spec, c_spec),
            scratch_shapes=[pltpu.VMEM((Cout, 1), jnp.float32),
                            pltpu.VMEM((Cout, 1), jnp.float32)]),
        compiler_params=pltpu.CompilerParams(
            dimension_semantics=("arbitrary", "arbitrary"),
            vmem_limit_bytes=vmem_limit),
        cost_estimate=pl.CostEstimate(
            flops=flops, transcendentals=Cout,
            bytes_accessed=bytes_p + bytes_w + 8 * Cout * 4),
    )(patches, w2d, g2d, b2d)

    # ---- pass 2: recompute matmul, apply y*scale + shift and LeakyReLU ----
    out3d = pl.pallas_call(
        _norm_kernel,
        out_shape=jax.ShapeDtypeStruct((N, Cout, S), jnp.float32),
        grid_spec=pltpu.PrefetchScalarGridSpec(
            num_scalar_prefetch=0,
            grid=grid,
            in_specs=[p_spec, w_spec, c_spec, c_spec],
            out_specs=pl.BlockSpec((1, Cout, tile_s), lambda n, s: (n, 0, s))),
        compiler_params=pltpu.CompilerParams(
            dimension_semantics=("parallel", "parallel"),
            vmem_limit_bytes=vmem_limit),
        cost_estimate=pl.CostEstimate(
            flops=flops, transcendentals=0,
            bytes_accessed=bytes_p + bytes_w + M * Cout * 4),
    )(patches, w2d, scale, shift)

    # [N, Cout, Ho*Wo] -> NCHW is a free reshape (no transpose).
    return out3d.reshape(N, Cout, Ho, Wo)


def _reference(x, weight, gamma, beta):
    y = jax.lax.conv_general_dilated(
        x, weight, window_strides=(2, 2), padding=((1, 1), (1, 1)),
        dimension_numbers=("NCHW", "OIHW", "NCHW"),
        preferred_element_type=jnp.float32)
    mean = y.mean(axis=(0, 2, 3), keepdims=True)
    var = ((y - mean) ** 2).mean(axis=(0, 2, 3), keepdims=True)
    z = gamma[None, :, None, None] * (y - mean) * jax.lax.rsqrt(var + EPS) \
        + beta[None, :, None, None]
    return jnp.where(z >= 0, z, NEG_SLOPE * z)


if __name__ == "__main__":
    key = jax.random.PRNGKey(0)
    k1, k2, k3, k4 = jax.random.split(key, 4)

    N, Cin, H, W = 2, 4, 16, 16
    Cout = 8

    x = jax.random.normal(k1, (N, Cin, H, W), dtype=jnp.float32)
    weight = 0.1 * jax.random.normal(k2, (Cout, Cin, 4, 4), dtype=jnp.float32)
    gamma = 1.0 + 0.1 * jax.random.normal(k3, (Cout,), dtype=jnp.float32)
    beta = 0.1 * jax.random.normal(k4, (Cout,), dtype=jnp.float32)

    out = jax.block_until_ready(conv4x4_lrelu(x, weight, gamma, beta))
    assert out.shape == (N, Cout, H // 2, W // 2)

    # Tight check against a matched-precision reference (bf16-rounded conv operands,
    # everything else f32 — exactly what the kernel's MXU path computes).
    xb = x.astype(jnp.bfloat16).astype(jnp.float32)
    wb = weight.astype(jnp.bfloat16).astype(jnp.float32)
    ref_matched = _reference(xb, wb, gamma, beta)
    assert jnp.allclose(out, ref_matched, atol=2e-3, rtol=2e-3), \
        float(jnp.max(jnp.abs(out - ref_matched)))

    # Looser sanity check against the pure-f32 reference (bf16 MXU operand rounding).
    ref = _reference(x, weight, gamma, beta)
    assert jnp.allclose(out, ref, atol=5e-2, rtol=5e-2), \
        float(jnp.max(jnp.abs(out - ref)))

    print("KERNEL_OK")
</pallas_src>

<mosaic_0001>
module attributes {stable_mosaic.version = 11 : i64} {
  func.func @_stats_kernel(%arg0: i32, %arg1: i32, %arg2: memref<1x64x64xbf16, #tpu.memory_space<vmem>>, %arg3: memref<8x64xbf16, #tpu.memory_space<vmem>>, %arg4: memref<8x1xf32, #tpu.memory_space<vmem>>, %arg5: memref<8x1xf32, #tpu.memory_space<vmem>>, %arg6: memref<8x1xf32, #tpu.memory_space<vmem>>, %arg7: memref<8x1xf32, #tpu.memory_space<vmem>>, %arg8: memref<8x1xf32, #tpu.memory_space<vmem>>, %arg9: memref<8x1xf32, #tpu.memory_space<vmem>>) attributes {dimension_semantics = [#tpu.dimension_semantics<arbitrary>, #tpu.dimension_semantics<arbitrary>], iteration_bounds = array<i64: 2, 1>, scalar_prefetch = 0 : i64, scratch_operands = 2 : i64, tpu.core_type = #tpu.core_type<tc>, window_params = [{transform_indices = @transform_0, window_bounds = array<i64: 1, 64, 64>}, {pipeline_mode = #tpu.pipeline_mode<synchronous>, transform_indices = @transform_1, window_bounds = array<i64: 8, 64>}, {pipeline_mode = #tpu.pipeline_mode<synchronous>, transform_indices = @transform_2, window_bounds = array<i64: 8, 1>}, {pipeline_mode = #tpu.pipeline_mode<synchronous>, transform_indices = @transform_3, window_bounds = array<i64: 8, 1>}, {pipeline_mode = #tpu.pipeline_mode<synchronous>, transform_indices = @transform_4, window_bounds = array<i64: 8, 1>}, {pipeline_mode = #tpu.pipeline_mode<synchronous>, transform_indices = @transform_5, window_bounds = array<i64: 8, 1>}]} {
    %c0_i32 = arith.constant 0 : i32
    %0 = arith.cmpi eq, %arg0, %c0_i32 : i32
    %c0_i32_0 = arith.constant 0 : i32
    %1 = arith.cmpi eq, %arg1, %c0_i32_0 : i32
    %2 = arith.andi %0, %1 : i1
    %3 = arith.extui %2 : i1 to i32
    %c0_i32_1 = arith.constant 0 : i32
    %4 = arith.cmpi ne, %3, %c0_i32_1 : i32
    scf.if %4 {
      %cst_18 = arith.constant 0.000000e+00 : f32
      %25 = vector.broadcast %cst_18 : f32 to vector<8x1xf32>
      %c0_19 = arith.constant 0 : index
      %c0_20 = arith.constant 0 : index
      %26 = vector.load %arg8[%c0_19, %c0_20] : memref<8x1xf32, #tpu.memory_space<vmem>>, vector<8x1xf32>
      tpu.vector_store %arg8[%c0_19, %c0_20], %25 {strides = array<i32>} : memref<8x1xf32, #tpu.memory_space<vmem>>, vector<8x1xf32>,
      %cst_21 = arith.constant 0.000000e+00 : f32
      %27 = vector.broadcast %cst_21 : f32 to vector<8x1xf32>
      %c0_22 = arith.constant 0 : index
      %c0_23 = arith.constant 0 : index
      %28 = vector.load %arg9[%c0_22, %c0_23] : memref<8x1xf32, #tpu.memory_space<vmem>>, vector<8x1xf32>
      tpu.vector_store %arg9[%c0_22, %c0_23], %27 {strides = array<i32>} : memref<8x1xf32, #tpu.memory_space<vmem>>, vector<8x1xf32>,
      %cst_24 = arith.constant 0.000000e+00 : f32
      %29 = vector.broadcast %cst_24 : f32 to vector<8x1xf32>
      %c0_25 = arith.constant 0 : index
      %c0_26 = arith.constant 0 : index
      %30 = vector.load %arg6[%c0_25, %c0_26] : memref<8x1xf32, #tpu.memory_space<vmem>>, vector<8x1xf32>
      tpu.vector_store %arg6[%c0_25, %c0_26], %29 {strides = array<i32>} : memref<8x1xf32, #tpu.memory_space<vmem>>, vector<8x1xf32>,
      %cst_27 = arith.constant 0.000000e+00 : f32
      %31 = vector.broadcast %cst_27 : f32 to vector<8x1xf32>
      %c0_28 = arith.constant 0 : index
      %c0_29 = arith.constant 0 : index
      %32 = vector.load %arg7[%c0_28, %c0_29] : memref<8x1xf32, #tpu.memory_space<vmem>>, vector<8x1xf32>
      tpu.vector_store %arg7[%c0_28, %c0_29], %31 {strides = array<i32>} : memref<8x1xf32, #tpu.memory_space<vmem>>, vector<8x1xf32>,
    } else {
    }
    %c0 = arith.constant 0 : index
    %c0_2 = arith.constant 0 : index
    %5 = vector.load %arg3[%c0, %c0_2] : memref<8x64xbf16, #tpu.memory_space<vmem>>, vector<8x64xbf16>
    %c0_3 = arith.constant 0 : index
    %c0_4 = arith.constant 0 : index
    %c0_5 = arith.constant 0 : index
    %6 = vector.load %arg2[%c0_3, %c0_4, %c0_5] : memref<1x64x64xbf16, #tpu.memory_space<vmem>>, vector<1x64x64xbf16>
    %7 = vector.shape_cast %6 : vector<1x64x64xbf16> to vector<64x64xbf16>
    %cst = arith.constant dense<0.000000e+00> : vector<8x64xf32>
    %8 = tpu.matmul %5, %7, %cst {dimension_numbers = #tpu.dot_dimension_numbers<[1], [0], [0], [1], [0, 0, 1, 1], [], []>} : vector<8x64xbf16>, vector<64x64xbf16>, vector<8x64xf32> -> vector<8x64xf32>
    %c0_6 = arith.constant 0 : index
    %c0_7 = arith.constant 0 : index
    %9 = vector.load %arg8[%c0_6, %c0_7] : memref<8x1xf32, #tpu.memory_space<vmem>>, vector<8x1xf32>
    %cst_8 = arith.constant dense<0.000000e+00> : vector<8xf32>
    %10 = vector.multi_reduction <add>, %8, %cst_8 [1] : vector<8x64xf32> to vector<8xf32>
    %11 = vector.shape_cast %10 : vector<8xf32> to vector<8x1xf32>
    %12 = arith.addf %9, %11 : vector<8x1xf32>
    %c0_9 = arith.constant 0 : index
    %c0_10 = arith.constant 0 : index
    %13 = vector.load %arg8[%c0_9, %c0_10] : memref<8x1xf32, #tpu.memory_space<vmem>>, vector<8x1xf32>
    tpu.vector_store %arg8[%c0_9, %c0_10], %12 {strides = array<i32>} : memref<8x1xf32, #tpu.memory_space<vmem>>, vector<8x1xf32>,
    %c0_11 = arith.constant 0 : index
    %c0_12 = arith.constant 0 : index
    %14 = vector.load %arg9[%c0_11, %c0_12] : memref<8x1xf32, #tpu.memory_space<vmem>>, vector<8x1xf32>
    %15 = arith.mulf %8, %8 : vector<8x64xf32>
    %cst_13 = arith.constant dense<0.000000e+00> : vector<8xf32>
    %16 = vector.multi_reduction <add>, %15, %cst_13 [1] : vector<8x64xf32> to vector<8xf32>
    %17 = vector.shape_cast %16 : vector<8xf32> to vector<8x1xf32>
    %18 = arith.addf %14, %17 : vector<8x1xf32>
    %c0_14 = arith.constant 0 : index
    %c0_15 = arith.constant 0 : index
    %19 = vector.load %arg9[%c0_14, %c0_15] : memref<8x1xf32, #tpu.memory_space<vmem>>, vector<8x1xf32>
    tpu.vector_store %arg9[%c0_14, %c0_15], %18 {strides = array<i32>} : memref<8x1xf32, #tpu.memory_space<vmem>>, vector<8x1xf32>,
    %c1_i32 = arith.constant 1 : i32
    %20 = arith.cmpi eq, %arg0, %c1_i32 : i32
    %c0_i32_16 = arith.constant 0 : i32
    %21 = arith.cmpi eq, %arg1, %c0_i32_16 : i32
    %22 = arith.andi %20, %21 : i1
    %23 = arith.extui %22 : i1 to i32
    %c0_i32_17 = arith.constant 0 : i32
    %24 = arith.cmpi ne, %23, %c0_i32_17 : i32
    scf.if %24 {
      %c0_18 = arith.constant 0 : index
      %c0_19 = arith.constant 0 : index
      %25 = vector.load %arg8[%c0_18, %c0_19] : memref<8x1xf32, #tpu.memory_space<vmem>>, vector<8x1xf32>
      %cst_20 = arith.constant 7.812500e-03 : f32
      %26 = vector.broadcast %cst_20 : f32 to vector<8x1xf32>
      %27 = arith.mulf %25, %26 : vector<8x1xf32>
      %c0_21 = arith.constant 0 : index
      %c0_22 = arith.constant 0 : index
      %28 = vector.load %arg9[%c0_21, %c0_22] : memref<8x1xf32, #tpu.memory_space<vmem>>, vector<8x1xf32>
      %cst_23 = arith.constant 7.812500e-03 : f32
      %29 = vector.broadcast %cst_23 : f32 to vector<8x1xf32>
      %30 = arith.mulf %28, %29 : vector<8x1xf32>
      %31 = arith.mulf %27, %27 : vector<8x1xf32>
      %32 = arith.subf %30, %31 : vector<8x1xf32>
      %cst_24 = arith.constant 0.000000e+00 : f32
      %33 = vector.broadcast %cst_24 : f32 to vector<8x1xf32>
      %34 = arith.maximumf %32, %33 : vector<8x1xf32>
      %c0_25 = arith.constant 0 : index
      %c0_26 = arith.constant 0 : index
      %35 = vector.load %arg4[%c0_25, %c0_26] : memref<8x1xf32, #tpu.memory_space<vmem>>, vector<8x1xf32>
      %cst_27 = arith.constant 9.99999974E-6 : f32
      %36 = vector.broadcast %cst_27 : f32 to vector<8x1xf32>
      %37 = arith.addf %34, %36 : vector<8x1xf32>
      %38 = math.rsqrt %37 : vector<8x1xf32>
      %39 = arith.mulf %35, %38 : vector<8x1xf32>
      %c0_28 = arith.constant 0 : index
      %c0_29 = arith.constant 0 : index
      %40 = vector.load %arg6[%c0_28, %c0_29] : memref<8x1xf32, #tpu.memory_space<vmem>>, vector<8x1xf32>
      tpu.vector_store %arg6[%c0_28, %c0_29], %39 {strides = array<i32>} : memref<8x1xf32, #tpu.memory_space<vmem>>, vector<8x1xf32>,
      %c0_30 = arith.constant 0 : index
      %c0_31 = arith.constant 0 : index
      %41 = vector.load %arg5[%c0_30, %c0_31] : memref<8x1xf32, #tpu.memory_space<vmem>>, vector<8x1xf32>
      %42 = arith.mulf %27, %39 : vector<8x1xf32>
      %43 = arith.subf %41, %42 : vector<8x1xf32>
      %c0_32 = arith.constant 0 : index
      %c0_33 = arith.constant 0 : index
      %44 = vector.load %arg7[%c0_32, %c0_33] : memref<8x1xf32, #tpu.memory_space<vmem>>, vector<8x1xf32>
      tpu.vector_store %arg7[%c0_32, %c0_33], %43 {strides = array<i32>} : memref<8x1xf32, #tpu.memory_space<vmem>>, vector<8x1xf32>,
    } else {
    }
    return
  }
  func.func @transform_0(%arg0: i32, %arg1: i32) -> (i32, i32, i32) {
    %c0_i32 = arith.constant 0 : i32
    %c0_i32_0 = arith.constant 0 : i32
    return %arg0, %c0_i32, %arg1 : i32, i32, i32
  }
  func.func @transform_1(%arg0: i32, %arg1: i32) -> (i32, i32) {
    %c0_i32 = arith.constant 0 : i32
    %c0_i32_0 = arith.constant 0 : i32
    %c0_i32_1 = arith.constant 0 : i32
    return %c0_i32, %c0_i32_0 : i32, i32
  }
  func.func @transform_2(%arg0: i32, %arg1: i32) -> (i32, i32) {
    %c0_i32 = arith.constant 0 : i32
    %c0_i32_0 = arith.constant 0 : i32
    %c0_i32_1 = arith.constant 0 : i32
    return %c0_i32, %c0_i32_0 : i32, i32
  }
  func.func @transform_3(%arg0: i32, %arg1: i32) -> (i32, i32) {
    %c0_i32 = arith.constant 0 : i32
    %c0_i32_0 = arith.constant 0 : i32
    %c0_i32_1 = arith.constant 0 : i32
    return %c0_i32, %c0_i32_0 : i32, i32
  }
  func.func @transform_4(%arg0: i32, %arg1: i32) -> (i32, i32) {
    %c0_i32 = arith.constant 0 : i32
    %c0_i32_0 = arith.constant 0 : i32
    %c0_i32_1 = arith.constant 0 : i32
    return %c0_i32, %c0_i32_0 : i32, i32
  }
  func.func @transform_5(%arg0: i32, %arg1: i32) -> (i32, i32) {
    %c0_i32 = arith.constant 0 : i32
    %c0_i32_0 = arith.constant 0 : i32
    %c0_i32_1 = arith.constant 0 : i32
    return %c0_i32, %c0_i32_0 : i32, i32
  }
}

module attributes {stable_mosaic.version = 11 : i64} {
  func.func @_norm_kernel(%arg0: i32, %arg1: i32, %arg2: memref<1x64x64xbf16, #tpu.memory_space<vmem>>, %arg3: memref<8x64xbf16, #tpu.memory_space<vmem>>, %arg4: memref<8x1xf32, #tpu.memory_space<vmem>>, %arg5: memref<8x1xf32, #tpu.memory_space<vmem>>, %arg6: memref<1x8x64xf32, #tpu.memory_space<vmem>>) attributes {dimension_semantics = [#tpu.dimension_semantics<parallel>, #tpu.dimension_semantics<parallel>], iteration_bounds = array<i64: 2, 1>, scalar_prefetch = 0 : i64, scratch_operands = 0 : i64, tpu.core_type = #tpu.core_type<tc>, window_params = [{transform_indices = @transform_0, window_bounds = array<i64: 1, 64, 64>}, {pipeline_mode = #tpu.pipeline_mode<synchronous>, transform_indices = @transform_1, window_bounds = array<i64: 8, 64>}, {pipeline_mode = #tpu.pipeline_mode<synchronous>, transform_indices = @transform_2, window_bounds = array<i64: 8, 1>}, {pipeline_mode = #tpu.pipeline_mode<synchronous>, transform_indices = @transform_3, window_bounds = array<i64: 8, 1>}, {transform_indices = @transform_4, window_bounds = array<i64: 1, 8, 64>}]} {
    %c0 = arith.constant 0 : index
    %c0_0 = arith.constant 0 : index
    %0 = vector.load %arg3[%c0, %c0_0] : memref<8x64xbf16, #tpu.memory_space<vmem>>, vector<8x64xbf16>
    %c0_1 = arith.constant 0 : index
    %c0_2 = arith.constant 0 : index
    %c0_3 = arith.constant 0 : index
    %1 = vector.load %arg2[%c0_1, %c0_2, %c0_3] : memref<1x64x64xbf16, #tpu.memory_space<vmem>>, vector<1x64x64xbf16>
    %2 = vector.shape_cast %1 : vector<1x64x64xbf16> to vector<64x64xbf16>
    %cst = arith.constant dense<0.000000e+00> : vector<8x64xf32>
    %3 = tpu.matmul %0, %2, %cst {dimension_numbers = #tpu.dot_dimension_numbers<[1], [0], [0], [1], [0, 0, 1, 1], [], []>} : vector<8x64xbf16>, vector<64x64xbf16>, vector<8x64xf32> -> vector<8x64xf32>
    %c0_4 = arith.constant 0 : index
    %c0_5 = arith.constant 0 : index
    %4 = vector.load %arg4[%c0_4, %c0_5] : memref<8x1xf32, #tpu.memory_space<vmem>>, vector<8x1xf32>
    %5 = vector.broadcast %4 : vector<8x1xf32> to vector<8x64xf32>
    %6 = arith.mulf %3, %5 : vector<8x64xf32>
    %c0_6 = arith.constant 0 : index
    %c0_7 = arith.constant 0 : index
    %7 = vector.load %arg5[%c0_6, %c0_7] : memref<8x1xf32, #tpu.memory_space<vmem>>, vector<8x1xf32>
    %8 = vector.broadcast %7 : vector<8x1xf32> to vector<8x64xf32>
    %9 = arith.addf %6, %8 : vector<8x64xf32>
    %cst_8 = arith.constant 0.000000e+00 : f32
    %10 = vector.broadcast %cst_8 : f32 to vector<8x64xf32>
    %11 = arith.cmpf oge, %9, %10 : vector<8x64xf32>
    %cst_9 = arith.constant 2.000000e-01 : f32
    %12 = vector.broadcast %cst_9 : f32 to vector<8x64xf32>
    %13 = arith.mulf %12, %9 : vector<8x64xf32>
    %14 = arith.select %11, %9, %13 : vector<8x64xi1>, vector<8x64xf32>
    %c0_10 = arith.constant 0 : index
    %c0_11 = arith.constant 0 : index
    %c0_12 = arith.constant 0 : index
    %15 = vector.load %arg6[%c0_10, %c0_11, %c0_12] : memref<1x8x64xf32, #tpu.memory_space<vmem>>, vector<1x8x64xf32>
    %16 = vector.shape_cast %15 : vector<1x8x64xf32> to vector<8x64xf32>
    %17 = vector.shape_cast %14 : vector<8x64xf32> to vector<1x8x64xf32>
    tpu.vector_store %arg6[%c0_10, %c0_11, %c0_12], %17 {strides = array<i32>} : memref<1x8x64xf32, #tpu.memory_space<vmem>>, vector<1x8x64xf32>,
    return
  }
  func.func @transform_0(%arg0: i32, %arg1: i32) -> (i32, i32, i32) {
    %c0_i32 = arith.constant 0 : i32
    %c0_i32_0 = arith.constant 0 : i32
    return %arg0, %c0_i32, %arg1 : i32, i32, i32
  }
  func.func @transform_1(%arg0: i32, %arg1: i32) -> (i32, i32) {
    %c0_i32 = arith.constant 0 : i32
    %c0_i32_0 = arith.constant 0 : i32
    %c0_i32_1 = arith.constant 0 : i32
    return %c0_i32, %c0_i32_0 : i32, i32
  }
  func.func @transform_2(%arg0: i32, %arg1: i32) -> (i32, i32) {
    %c0_i32 = arith.constant 0 : i32
    %c0_i32_0 = arith.constant 0 : i32
    %c0_i32_1 = arith.constant 0 : i32
    return %c0_i32, %c0_i32_0 : i32, i32
  }
  func.func @transform_3(%arg0: i32, %arg1: i32) -> (i32, i32) {
    %c0_i32 = arith.constant 0 : i32
    %c0_i32_0 = arith.constant 0 : i32
    %c0_i32_1 = arith.constant 0 : i32
    return %c0_i32, %c0_i32_0 : i32, i32
  }
  func.func @transform_4(%arg0: i32, %arg1: i32) -> (i32, i32, i32) {
    %c0_i32 = arith.constant 0 : i32
    %c0_i32_0 = arith.constant 0 : i32
    return %arg0, %c0_i32, %arg1 : i32, i32, i32
  }
}

</mosaic_0001>

<llo_original>
// kernel: conv4x4_lrelu.2
$region0: #{conv4x4_lrelu.2}
  #allocation0 [shape = 'u32[]', space=smem, size = 0x4, offset = 0x4, fixed_abs, tag = 'smem constant byte address 0x4 - core index']
  #allocation1 [shape = 'u32[144,128]{1,0:T(1,128)}', space=vmem, size = 0x12000, scoped, tag = 'internal scratch']
  #allocation2 [shape = 'f32[8,1]{1,0:T(8,128)}', space=vmem, size = 0x1000, scoped, tag = 'scratch operand']
  #allocation3 [shape = 'f32[8,1]{1,0:T(8,128)}', space=vmem, size = 0x1000, scoped, tag = 'scratch operand']
  %s0 = inlined_call_operand.vmem [shape: bf16[2,64,64], index: 0, kind: input, shape index: {}]
  %s1 = inlined_call_operand.vmem [shape: bf16[8,64], index: 1, kind: input, shape index: {}]
  %s2 = inlined_call_operand.vmem [shape: f32[8,1], index: 2, kind: input, shape index: {}]
  %s3 = inlined_call_operand.vmem [shape: f32[8,1], index: 3, kind: input, shape index: {}]
  %s4 = inlined_call_operand.vmem [shape: f32[8,1], index: 4, kind: output, shape index: {0}]
  %s5 = inlined_call_operand.vmem [shape: f32[8,1], index: 5, kind: output, shape index: {1}]
  %6 = xla_tuple %s4, %s5
  %s7 = sld [smem:[#allocation0]]
  $region65: #{conv4x4_lrelu.2} parent=0
    _
  %s9 = ssub.s32 1, %s7
  %s10 = scalar_select 0, %s9, %s7
  loop: start=0, step=1, limit=4
  $region2: #{conv4x4_lrelu.2} parent=0 // loop_pre_header
    _
  $region3: #{conv4x4_lrelu.2} parent=0 // loop_header
    %s12 = sphi 0, %s16
    %p13 = scmp.ge.s32.totalorder %s12, 4
    %s19 = sphi 0, %s31
    %s20 = sphi 0, %s27
    %s21 = sphi 0, %s19
    %s22 = sphi 0, %s20
    %s23 = sphi 0, %s21
    %s24 = sphi 0, %s22
    %s36 = sphi 0, %s38
    %s39 = sphi 0, %s36
    %s40 = sphi 0, %s39
    %s56 = sphi 0, %s40
    %s60 = sphi 0, %s60
    %s62 = sphi 0, %s60
    %s63 = sphi 0, %s62
    %s77 = sphi 0, %s63
    %s81 = sphi 0, %s81
    %s83 = sphi 0, %s81
    %s84 = sphi 0, %s83
    %s98 = sphi 0, %s84
    %s102 = sphi 0, %s102
    %s104 = sphi 0, %s102
    %s105 = sphi 0, %s104
    %s119 = sphi 0, %s105
    %s123 = sphi 0, %s123
    %s125 = sphi 0, %s123
    %s126 = sphi 0, %s125
    %s140 = sphi 0, %s126
    %s144 = sphi 0, %s144
    %s146 = sphi 0, %s144
    %s147 = sphi 0, %s146
    %s161 = sphi 0, %s147
  $region4: #{conv4x4_lrelu.2} parent=0 // loop_header_branch
    %15 = sbr.rel (%p13) target = $region8
  $region5: #{conv4x4_lrelu.2} parent=0 // loop_body
    %s17 = ssub.s32 %s12, 1
    %s18 = ssub.s32 %s12, 2
    %s25 = sadd.s32 1, %s20
    %p26 = scmp.ge.s32.totalorder %s25, 1
    %s27 = scalar_select %p26, 0, %s25
    %s28 = sadd.s32 1, %s19
    %s29 = scalar_select %p26, %s28, %s19
    %p30 = scmp.ge.s32.totalorder %s29, 2
    %s31 = scalar_select %p30, 0, %s29
    %s32 = ssub.s32 %s19, %s31
    %s33 = ssub.s32 %s20, %s27
    %s34 = sor.u32 %s32, %s33
    %p35 = scmp.eq.s32.totalorder %s34, 0
    %s37 = sadd.s32 %s36, 1
    %s38 = scalar_select %p35, %s36, %s37
    %p41 = pneg %p35
    %p42 = scmp.eq.s32.totalorder %s12, 1
    %p43 = por %p41, %p42
    %p44 = scmp.ne.s32.totalorder %s36, %s39
    %p45 = scmp.eq.s32.totalorder %s12, 0
    %p46 = por %p44, %p45
    %p47 = scmp.ne.s32.totalorder %s36, %s39
    %p48 = scmp.eq.s32.totalorder %s17, 1
    %p49 = por %p47, %p48
    %p50 = scmp.ne.s32.totalorder %s39, %s40
    %p51 = scmp.eq.s32.totalorder %s17, 0
    %p52 = por %p50, %p51
    %p53 = scmp.ne.s32.totalorder %s39, %s40
    %p54 = scmp.eq.s32.totalorder %s18, 1
    %p55 = por %p53, %p54
    %p57 = scmp.ne.s32.totalorder %s40, %s56
    %p58 = scmp.eq.s32.totalorder %s18, 0
    %p59 = por %p57, %p58
    %s61 = sadd.s32 %s60, 1
    %p64 = scmp.eq.s32.totalorder %s12, 1
    %p65 = scmp.ne.s32.totalorder %s60, %s62
    %p66 = scmp.eq.s32.totalorder %s12, 0
    %p67 = por %p65, %p66
    %p68 = scmp.ne.s32.totalorder %s60, %s62
    %p69 = scmp.eq.s32.totalorder %s17, 1
    %p70 = por %p68, %p69
    %p71 = scmp.ne.s32.totalorder %s62, %s63
    %p72 = scmp.eq.s32.totalorder %s17, 0
    %p73 = por %p71, %p72
    %p74 = scmp.ne.s32.totalorder %s62, %s63
    %p75 = scmp.eq.s32.totalorder %s18, 1
    %p76 = por %p74, %p75
    %p78 = scmp.ne.s32.totalorder %s63, %s77
    %p79 = scmp.eq.s32.totalorder %s18, 0
    %p80 = por %p78, %p79
    %s82 = sadd.s32 %s81, 1
    %p85 = scmp.eq.s32.totalorder %s12, 1
    %p86 = scmp.ne.s32.totalorder %s81, %s83
    %p87 = scmp.eq.s32.totalorder %s12, 0
    %p88 = por %p86, %p87
    %p89 = scmp.ne.s32.totalorder %s81, %s83
    %p90 = scmp.eq.s32.totalorder %s17, 1
    %p91 = por %p89, %p90
    %p92 = scmp.ne.s32.totalorder %s83, %s84
    %p93 = scmp.eq.s32.totalorder %s17, 0
    %p94 = por %p92, %p93
    %p95 = scmp.ne.s32.totalorder %s83, %s84
    %p96 = scmp.eq.s32.totalorder %s18, 1
    %p97 = por %p95, %p96
    %p99 = scmp.ne.s32.totalorder %s84, %s98
    %p100 = scmp.eq.s32.totalorder %s18, 0
    %p101 = por %p99, %p100
    %s103 = sadd.s32 %s102, 1
    %p106 = scmp.eq.s32.totalorder %s12, 1
    %p107 = scmp.ne.s32.totalorder %s102, %s104
    %p108 = scmp.eq.s32.totalorder %s12, 0
    %p109 = por %p107, %p108
    %p110 = scmp.ne.s32.totalorder %s102, %s104
    %p111 = scmp.eq.s32.totalorder %s17, 1
    %p112 = por %p110, %p111
    %p113 = scmp.ne.s32.totalorder %s104, %s105
    %p114 = scmp.eq.s32.totalorder %s17, 0
    %p115 = por %p113, %p114
    %p116 = scmp.ne.s32.totalorder %s104, %s105
    %p117 = scmp.eq.s32.totalorder %s18, 1
    %p118 = por %p116, %p117
    %p120 = scmp.ne.s32.totalorder %s105, %s119
    %p121 = scmp.eq.s32.totalorder %s18, 0
    %p122 = por %p120, %p121
    %s124 = sadd.s32 %s123, 1
    %p127 = scmp.eq.s32.totalorder %s12, 1
    %p128 = scmp.ne.s32.totalorder %s123, %s125
    %p129 = scmp.eq.s32.totalorder %s12, 0
    %p130 = por %p128, %p129
    %p131 = scmp.ne.s32.totalorder %s123, %s125
    %p132 = scmp.eq.s32.totalorder %s17, 1
    %p133 = por %p131, %p132
    %p134 = scmp.ne.s32.totalorder %s125, %s126
    %p135 = scmp.eq.s32.totalorder %s17, 0
    %p136 = por %p134, %p135
    %p137 = scmp.ne.s32.totalorder %s125, %s126
    %p138 = scmp.eq.s32.totalorder %s18, 1
    %p139 = por %p137, %p138
    %p141 = scmp.ne.s32.totalorder %s126, %s140
    %p142 = scmp.eq.s32.totalorder %s18, 0
    %p143 = por %p141, %p142
    %s145 = sadd.s32 %s144, 1
    %p148 = scmp.eq.s32.totalorder %s12, 1
    %p149 = scmp.ne.s32.totalorder %s144, %s146
    %p150 = scmp.eq.s32.totalorder %s12, 0
    %p151 = por %p149, %p150
    %p152 = scmp.ne.s32.totalorder %s144, %s146
    %p153 = scmp.eq.s32.totalorder %s17, 1
    %p154 = por %p152, %p153
    %p155 = scmp.ne.s32.totalorder %s146, %s147
    %p156 = scmp.eq.s32.totalorder %s17, 0
    %p157 = por %p155, %p156
    %p158 = scmp.ne.s32.totalorder %s146, %s147
    %p159 = scmp.eq.s32.totalorder %s18, 1
    %p160 = por %p158, %p159
    %p162 = scmp.ne.s32.totalorder %s147, %s161
    %p163 = scmp.eq.s32.totalorder %s18, 0
    %p164 = por %p162, %p163
    %p165 = scmp.le.s32.totalorder 1, %s12
    %p166 = scmp.lt.s32.totalorder %s12, 3
    %p167 = pnand %p165, %p166
    %p168 = pneg %p167
    // Predicated region
    $region9: #{conv4x4_lrelu.2} parent=5 // pred_check
      _
    $region10: #{conv4x4_lrelu.2} parent=5 // pred_check_branch
      %170 = sbr.rel (%p167) target = $region12
    $region11: #{conv4x4_lrelu.2} parent=5 // pred_region
      %s171 = ssub.s32 %s12, 1
      // Predicated region
      $region13: #{conv4x4_lrelu.2} parent=11 // pred_check
        %p172 = pneg %p73
      $region14: #{conv4x4_lrelu.2} parent=11 // pred_check_branch
        %174 = sbr.rel (%p172) target = $region16
      $region15: #{conv4x4_lrelu.2} parent=11 // pred_region
        _
      $region16: #{conv4x4_lrelu.2} parent=11 // pred_fallthru
        _
      // Predicated region
      $region17: #{conv4x4_lrelu.2} parent=11 // pred_check
        %p175 = pneg %p94
      $region18: #{conv4x4_lrelu.2} parent=11 // pred_check_branch
        %177 = sbr.rel (%p175) target = $region20
      $region19: #{conv4x4_lrelu.2} parent=11 // pred_region
        _
      $region20: #{conv4x4_lrelu.2} parent=11 // pred_fallthru
        _
      // Predicated region
      $region21: #{conv4x4_lrelu.2} parent=11 // pred_check
        %p178 = pneg %p115
      $region22: #{conv4x4_lrelu.2} parent=11 // pred_check_branch
        %180 = sbr.rel (%p178) target = $region24
      $region23: #{conv4x4_lrelu.2} parent=11 // pred_region
        _
      $region24: #{conv4x4_lrelu.2} parent=11 // pred_fallthru
        _
    $region12: #{conv4x4_lrelu.2} parent=5 // pred_fallthru
      _
    %p181 = scmp.lt.s32.totalorder %s12, 2
    // Predicated region
    $region25: #{conv4x4_lrelu.2} parent=5 // pred_check
      %p182 = pneg %p181
    $region26: #{conv4x4_lrelu.2} parent=5 // pred_check_branch
      %184 = sbr.rel (%p182) target = $region28
    $region27: #{conv4x4_lrelu.2} parent=5 // pred_region
      // Predicated region
      $region29: #{conv4x4_lrelu.2} parent=27 // pred_check
        %p185 = pneg %p46
      $region30: #{conv4x4_lrelu.2} parent=27 // pred_check_branch
        %187 = sbr.rel (%p185) target = $region32
      $region31: #{conv4x4_lrelu.2} parent=27 // pred_region
        %p188 = scmp.lt.s32.totalorder %s19, 1
        %s189 = scalar_select %p188, %s19, 1
        %p190 = scmp.lt.s32.totalorder %s20, 0
        %s191 = scalar_select %p190, %s20, 0
        %s192 = smul.addr %s189, 8
        %s193 = sadd.s32 %s191, %s192
        %s194 = smul.addr %s193, 4
        %s195 = scalar_lea.vmem %s0, %s194
      $region32: #{conv4x4_lrelu.2} parent=27 // pred_fallthru
        _
    $region28: #{conv4x4_lrelu.2} parent=5 // pred_fallthru
      _
    %p196 = scmp.le.s32.totalorder 1, %s12
    %p197 = scmp.lt.s32.totalorder %s12, 3
    %p198 = pnand %p196, %p197
    %p199 = pneg %p198
    // Predicated region
    $region33: #{conv4x4_lrelu.2} parent=5 // pred_check
      _
    $region34: #{conv4x4_lrelu.2} parent=5 // pred_check_branch
      %201 = sbr.rel (%p198) target = $region36
    $region35: #{conv4x4_lrelu.2} parent=5 // pred_region
      %s202 = ssub.s32 %s12, 1
      %p203 = scmp.lt.s32.totalorder %s21, 1
      %s204 = scalar_select %p203, %s21, 1
      %p205 = scmp.lt.s32.totalorder %s22, 0
      %s206 = scalar_select %p205, %s22, 0
      %s207 = smul.addr %s204, 8
      %s208 = sadd.s32 %s206, %s207
      %s209 = smul.addr %s208, 4
      %s210 = scalar_lea.vmem %s0, %s209
      %p211 = pneg %p52
      %p212 = pneg %p49
      %p213 = pneg %p73
      %p214 = pneg %p70
      %p215 = pneg %p94
      %p216 = pneg %p91
      %p217 = pneg %p115
      %p218 = pneg %p112
      %p219 = pneg %p136
      %p220 = pneg %p133
      %p221 = pneg %p157
      %p222 = pneg %p154
      %p223 = scmp.lt.s32.totalorder %s21, 1
      %s224 = scalar_select %p223, %s21, 1
      %p225 = scmp.lt.s32.totalorder %s22, 0
      %s226 = scalar_select %p225, %s22, 0
      %s227 = smul.addr %s224, 8
      %s228 = sadd.s32 %s226, %s227
      %s229 = smul.addr %s228, 4
      %s230 = scalar_lea.vmem %s0, %s229
      %p232 = scmp.eq.s32.totalorder %s21, 0
      %p233 = scmp.eq.s32.totalorder %s22, 0
      %p234 = pnand %p232, %p233
      %p235 = pneg %p234
      // Predicated region
      $region37: #{conv4x4_lrelu.2} parent=35 // pred_check
        _
      $region38: #{conv4x4_lrelu.2} parent=35 // pred_check_branch
        %237 = sbr.rel (%p234) target = $region40
      $region39: #{conv4x4_lrelu.2} parent=35 // pred_region
        %vm238 = vcmask 7168
        %239 = vst.msk [vmem:[#allocation2] sm:$0xff] %vm238, 0.0
        %240 = vst.msk [vmem:[#allocation3] sm:$0xff] %vm238, 0.0
        %241 = vst.msk [vmem:[%s4] sm:$0xff] %vm238, 0.0
        %242 = vst.msk [vmem:[%s5] sm:$0xff] %vm238, 0.0
      $region40: #{conv4x4_lrelu.2} parent=35 // pred_fallthru
        _
      %v243 = vld [vmem:[%s1] sm:$0xf]
      %v244 = vld [vmem:[%s230] sm:$0xf]
      %v245 = vld [vmem:[%s230 + $0x4] sm:$0xf]
      %v246 = vld [vmem:[%s230 + $0x8] sm:$0xf]
      %v247 = vld [vmem:[%s230 + $0xc] sm:$0xf]
      %v248 = vld [vmem:[%s230 + $0x10] sm:$0xf]
      %v249 = vld [vmem:[%s230 + $0x14] sm:$0xf]
      %v250 = vld [vmem:[%s230 + $0x18] sm:$0xf]
      %v251 = vld [vmem:[%s230 + $0x1c] sm:$0xf]
      %v260 = vunpack.c.l.b16 %v244
      %v261 = vunpack.c.l.b16 %v245
      %v262 = vunpack.c.l.b16 %v246
      %v263 = vunpack.c.l.b16 %v247
      %v264 = vunpack.c.l.b16 %v248
      %v265 = vunpack.c.l.b16 %v249
      %v266 = vunpack.c.l.b16 %v250
      %v267 = vunpack.c.l.b16 %v251
      %v268 = vpack.c.b16 %v261, %v260
      %v269 = vpack.c.b16 %v263, %v262
      %v270 = vpack.c.b16 %v265, %v264
      %v271 = vpack.c.b16 %v267, %v266
      %vm276 = vcmask 523264
      %v278 = vsel %vm276, %v243, 0
      %280 = vmatprep.subr.bf16.mxu0 0
      %281 = vmatpush1.bf16.msra.mxu0 %v268
      %282 = vmatprep.subr.bf16.mxu0 0
      %283 = vmatpush1.bf16.msra.mxu0 %v269
      %284 = vmatprep.subr.bf16.mxu0 0
      %285 = vmatpush1.bf16.msra.mxu0 %v270
      %286 = vmatprep.subr.bf16.mxu0 0
      %287 = vmatpush1.bf16.msra.mxu0 %v271
      %288 = vmatprep.subr.bf16.mxu0 0
      %289 = vmatpush1.bf16.msra.mxu0 0
      %290 = vmatprep.subr.bf16.mxu0 0
      %291 = vmatpush1.bf16.msra.mxu0 0
      %292 = vmatprep.subr.bf16.mxu0 0
      %293 = vmatpush1.bf16.msra.mxu0 0
      %294 = vmatprep.subr.bf16.mxu0 0
      %295 = vmatpush1.bf16.msra.mxu0 0
      %296 = vmatprep.subr.bf16.mxu0 0
      %297 = vmatpush1.bf16.msra.mxu0 0
      %298 = vmatprep.subr.bf16.mxu0 0
      %299 = vmatpush1.bf16.msra.mxu0 0
      %300 = vmatprep.subr.bf16.mxu0 0
      %301 = vmatpush1.bf16.msra.mxu0 0
      %302 = vmatprep.subr.bf16.mxu0 0
      %303 = vmatpush1.bf16.msra.mxu0 0
      %304 = vmatprep.subr.bf16.mxu0 0
      %305 = vmatpush1.bf16.msra.mxu0 0
      %306 = vmatprep.subr.bf16.mxu0 0
      %307 = vmatpush1.bf16.msra.mxu0 0
      %308 = vmatprep.subr.bf16.mxu0 0
      %309 = vmatpush1.bf16.msra.mxu0 0
      %310 = vmatprep.subr.bf16.mxu0 0
      %311 = vmatpush1.bf16.msra.mxu0 0
      %312 = vmatprep.mubr.bf16.mxu0 0
      %313 = vmatmul.mubr.bf16.gmra.mrb[0].mxu0 %v278
      %v314 = vpop.f32.mrb[0].mxu0
      %v315 = vadd.f32 0.0, %v314
      %v316 = vpop.f32.mrb[0].mxu0
      %v317 = vpop.f32.mrb[0].mxu0
      %v318 = vpop.f32.mrb[0].mxu0
      %319 = vdwg.mxu0
      %v320 = vld [vmem:[#allocation2] sm:$0xff]
      %v321 = vsel %vm276, %v315, 0.0
      %322 = vadd.xlane.f32.xlu0 %v321
      %v323 = vpop.xlane.xlu0 %322
      %v324 = vadd.f32 %v320, %v323
      %vm325 = vcmask 7168
      %326 = vst.msk [vmem:[#allocation2] sm:$0xff] %vm325, %v324
      %v327 = vld [vmem:[#allocation3] sm:$0xff]
      %v328 = vmul.f32 %v315, %v315
      %v329 = vsel %vm276, %v328, 0.0
      %330 = vadd.xlane.f32.xlu0 %v329
      %v331 = vpop.xlane.xlu0 %330
      %v332 = vadd.f32 %v327, %v331
      %333 = vst.msk [vmem:[#allocation3] sm:$0xff] %vm325, %v332
      %p334 = scmp.eq.s32.totalorder %s21, 1
      %p335 = pnand %p334, %p233
      %p336 = pneg %p335
      // Predicated region
      $region41: #{conv4x4_lrelu.2} parent=35 // pred_check
        _
      $region42: #{conv4x4_lrelu.2} parent=35 // pred_check_branch
        %338 = sbr.rel (%p335) target = $region44
      $region43: #{conv4x4_lrelu.2} parent=35 // pred_region
        %v339 = vld [vmem:[#allocation2] sm:$0xff]
        %v340 = vmul.f32 %v339, 0.0078125
        %v341 = vld [vmem:[#allocation3] sm:$0xff]
        %v342 = vmul.f32 %v341, 0.0078125
        %v343 = vmul.f32 %v340, %v340
        %v344 = vsub.f32 %v342, %v343
        %v345 = vmax.f32 %v344, 0.0
        %v346 = vld [vmem:[%s2] sm:$0xff]
        %v347 = vadd.f32 %v345, 1e-05
        %v348 = vrsqrt.pop %v347
        %v349 = vmul.f32 %v346, %v348
        %350 = vst.msk [vmem:[%s4] sm:$0xff] %vm325, %v349
        %v351 = vld [vmem:[%s3] sm:$0xff]
        %v352 = vmul.f32 %v340, %v349
        %v353 = vsub.f32 %v351, %v352
        %354 = vst.msk [vmem:[%s5] sm:$0xff] %vm325, %v353
      $region44: #{conv4x4_lrelu.2} parent=35 // pred_fallthru
        _
      // Predicated region
      $region45: #{conv4x4_lrelu.2} parent=35 // pred_check
        %p355 = pneg %p133
      $region46: #{conv4x4_lrelu.2} parent=35 // pred_check_branch
        %357 = sbr.rel (%p355) target = $region48
      $region47: #{conv4x4_lrelu.2} parent=35 // pred_region
        _
      $region48: #{conv4x4_lrelu.2} parent=35 // pred_fallthru
        _
      // Predicated region
      $region49: #{conv4x4_lrelu.2} parent=35 // pred_check
        %p358 = pneg %p154
      $region50: #{conv4x4_lrelu.2} parent=35 // pred_check_branch
        %360 = sbr.rel (%p358) target = $region52
      $region51: #{conv4x4_lrelu.2} parent=35 // pred_region
        _
      $region52: #{conv4x4_lrelu.2} parent=35 // pred_fallthru
        _
      // Predicated region
      $region53: #{conv4x4_lrelu.2} parent=35 // pred_check
        %p361 = pneg %p133
      $region54: #{conv4x4_lrelu.2} parent=35 // pred_check_branch
        %363 = sbr.rel (%p361) target = $region56
      $region55: #{conv4x4_lrelu.2} parent=35 // pred_region
        _
      $region56: #{conv4x4_lrelu.2} parent=35 // pred_fallthru
        _
      // Predicated region
      $region57: #{conv4x4_lrelu.2} parent=35 // pred_check
        %p364 = pneg %p154
      $region58: #{conv4x4_lrelu.2} parent=35 // pred_check_branch
        %366 = sbr.rel (%p364) target = $region60
      $region59: #{conv4x4_lrelu.2} parent=35 // pred_region
        _
      $region60: #{conv4x4_lrelu.2} parent=35 // pred_fallthru
        _
    $region36: #{conv4x4_lrelu.2} parent=5 // pred_fallthru
      _
    %p367 = scmp.le.s32.totalorder 2, %s12
    // Predicated region
    $region61: #{conv4x4_lrelu.2} parent=5 // pred_check
      %p368 = pneg %p367
    $region62: #{conv4x4_lrelu.2} parent=5 // pred_check_branch
      %370 = sbr.rel (%p368) target = $region64
    $region63: #{conv4x4_lrelu.2} parent=5 // pred_region
      %s371 = ssub.s32 %s12, 2
    $region64: #{conv4x4_lrelu.2} parent=5 // pred_fallthru
      _
  $region6: #{conv4x4_lrelu.2} parent=0 // loop_footer
    %s16 = sadd.s32 1, %s12
  $region7: #{conv4x4_lrelu.2} parent=0 // loop_footer_branch
    %11 = sbr.rel target = $region3
  $region8: #{conv4x4_lrelu.2} parent=0 // loop_exit
    _

// kernel: conv4x4_lrelu.3
$region0: #{conv4x4_lrelu.3}
  #allocation0 [shape = 'u32[]', space=smem, size = 0x4, offset = 0x4, fixed_abs, tag = 'smem constant byte address 0x4 - core index']
  #allocation1 [shape = 'u32[144,128]{1,0:T(1,128)}', space=vmem, size = 0x12000, scoped, tag = 'internal scratch']
  %s0 = inlined_call_operand.vmem [shape: bf16[2,64,64], index: 0, kind: input, shape index: {}]
  %s1 = inlined_call_operand.vmem [shape: bf16[8,64], index: 1, kind: input, shape index: {}]
  %s2 = inlined_call_operand.vmem [shape: f32[8,1], index: 2, kind: input, shape index: {}]
  %s3 = inlined_call_operand.vmem [shape: f32[8,1], index: 3, kind: input, shape index: {}]
  %s4 = inlined_call_operand.vmem [shape: f32[2,8,64], index: 4, kind: output, shape index: {}]
  %s5 = sld [smem:[#allocation0]]
  $region49: #{conv4x4_lrelu.3} parent=0
    _
  %s7 = ssub.s32 1, %s5
  %s8 = scalar_select 0, %s7, %s5
  loop: start=0, step=1, limit=4
  $region2: #{conv4x4_lrelu.3} parent=0 // loop_pre_header
    _
  $region3: #{conv4x4_lrelu.3} parent=0 // loop_header
    %s10 = sphi 0, %s14
    %p11 = scmp.ge.s32.totalorder %s10, 4
    %s17 = sphi 0, %s29
    %s18 = sphi 0, %s25
    %s19 = sphi 0, %s17
    %s20 = sphi 0, %s18
    %s21 = sphi 0, %s19
    %s22 = sphi 0, %s20
    %s34 = sphi 0, %s36
    %s37 = sphi 0, %s34
    %s38 = sphi 0, %s37
    %s54 = sphi 0, %s38
    %s58 = sphi 0, %s58
    %s60 = sphi 0, %s58
    %s61 = sphi 0, %s60
    %s75 = sphi 0, %s61
    %s79 = sphi 0, %s79
    %s81 = sphi 0, %s79
    %s82 = sphi 0, %s81
    %s96 = sphi 0, %s82
    %s100 = sphi 0, %s100
    %s102 = sphi 0, %s100
    %s103 = sphi 0, %s102
    %s117 = sphi 0, %s103
    %s125 = sphi 0, %s127
    %s128 = sphi 0, %s125
    %s129 = sphi 0, %s128
    %s145 = sphi 0, %s129
  $region4: #{conv4x4_lrelu.3} parent=0 // loop_header_branch
    %13 = sbr.rel (%p11) target = $region8
  $region5: #{conv4x4_lrelu.3} parent=0 // loop_body
    %s15 = ssub.s32 %s10, 1
    %s16 = ssub.s32 %s10, 2
    %s23 = sadd.s32 1, %s18
    %p24 = scmp.ge.s32.totalorder %s23, 1
    %s25 = scalar_select %p24, 0, %s23
    %s26 = sadd.s32 1, %s17
    %s27 = scalar_select %p24, %s26, %s17
    %p28 = scmp.ge.s32.totalorder %s27, 2
    %s29 = scalar_select %p28, 0, %s27
    %s30 = ssub.s32 %s17, %s29
    %s31 = ssub.s32 %s18, %s25
    %s32 = sor.u32 %s30, %s31
    %p33 = scmp.eq.s32.totalorder %s32, 0
    %s35 = sadd.s32 %s34, 1
    %s36 = scalar_select %p33, %s34, %s35
    %p39 = pneg %p33
    %p40 = scmp.eq.s32.totalorder %s10, 1
    %p41 = por %p39, %p40
    %p42 = scmp.ne.s32.totalorder %s34, %s37
    %p43 = scmp.eq.s32.totalorder %s10, 0
    %p44 = por %p42, %p43
    %p45 = scmp.ne.s32.totalorder %s34, %s37
    %p46 = scmp.eq.s32.totalorder %s15, 1
    %p47 = por %p45, %p46
    %p48 = scmp.ne.s32.totalorder %s37, %s38
    %p49 = scmp.eq.s32.totalorder %s15, 0
    %p50 = por %p48, %p49
    %p51 = scmp.ne.s32.totalorder %s37, %s38
    %p52 = scmp.eq.s32.totalorder %s16, 1
    %p53 = por %p51, %p52
    %p55 = scmp.ne.s32.totalorder %s38, %s54
    %p56 = scmp.eq.s32.totalorder %s16, 0
    %p57 = por %p55, %p56
    %s59 = sadd.s32 %s58, 1
    %p62 = scmp.eq.s32.totalorder %s10, 1
    %p63 = scmp.ne.s32.totalorder %s58, %s60
    %p64 = scmp.eq.s32.totalorder %s10, 0
    %p65 = por %p63, %p64
    %p66 = scmp.ne.s32.totalorder %s58, %s60
    %p67 = scmp.eq.s32.totalorder %s15, 1
    %p68 = por %p66, %p67
    %p69 = scmp.ne.s32.totalorder %s60, %s61
    %p70 = scmp.eq.s32.totalorder %s15, 0
    %p71 = por %p69, %p70
    %p72 = scmp.ne.s32.totalorder %s60, %s61
    %p73 = scmp.eq.s32.totalorder %s16, 1
    %p74 = por %p72, %p73
    %p76 = scmp.ne.s32.totalorder %s61, %s75
    %p77 = scmp.eq.s32.totalorder %s16, 0
    %p78 = por %p76, %p77
    %s80 = sadd.s32 %s79, 1
    %p83 = scmp.eq.s32.totalorder %s10, 1
    %p84 = scmp.ne.s32.totalorder %s79, %s81
    %p85 = scmp.eq.s32.totalorder %s10, 0
    %p86 = por %p84, %p85
    %p87 = scmp.ne.s32.totalorder %s79, %s81
    %p88 = scmp.eq.s32.totalorder %s15, 1
    %p89 = por %p87, %p88
    %p90 = scmp.ne.s32.totalorder %s81, %s82
    %p91 = scmp.eq.s32.totalorder %s15, 0
    %p92 = por %p90, %p91
    %p93 = scmp.ne.s32.totalorder %s81, %s82
    %p94 = scmp.eq.s32.totalorder %s16, 1
    %p95 = por %p93, %p94
    %p97 = scmp.ne.s32.totalorder %s82, %s96
    %p98 = scmp.eq.s32.totalorder %s16, 0
    %p99 = por %p97, %p98
    %s101 = sadd.s32 %s100, 1
    %p104 = scmp.eq.s32.totalorder %s10, 1
    %p105 = scmp.ne.s32.totalorder %s100, %s102
    %p106 = scmp.eq.s32.totalorder %s10, 0
    %p107 = por %p105, %p106
    %p108 = scmp.ne.s32.totalorder %s100, %s102
    %p109 = scmp.eq.s32.totalorder %s15, 1
    %p110 = por %p108, %p109
    %p111 = scmp.ne.s32.totalorder %s102, %s103
    %p112 = scmp.eq.s32.totalorder %s15, 0
    %p113 = por %p111, %p112
    %p114 = scmp.ne.s32.totalorder %s102, %s103
    %p115 = scmp.eq.s32.totalorder %s16, 1
    %p116 = por %p114, %p115
    %p118 = scmp.ne.s32.totalorder %s103, %s117
    %p119 = scmp.eq.s32.totalorder %s16, 0
    %p120 = por %p118, %p119
    %s121 = ssub.s32 %s17, %s29
    %s122 = ssub.s32 %s18, %s25
    %s123 = sor.u32 %s121, %s122
    %p124 = scmp.eq.s32.totalorder %s123, 0
    %s126 = sadd.s32 %s125, 1
    %s127 = scalar_select %p124, %s125, %s126
    %p130 = pneg %p124
    %p131 = scmp.eq.s32.totalorder %s10, 1
    %p132 = por %p130, %p131
    %p133 = scmp.ne.s32.totalorder %s125, %s128
    %p134 = scmp.eq.s32.totalorder %s10, 0
    %p135 = por %p133, %p134
    %p136 = scmp.ne.s32.totalorder %s125, %s128
    %p137 = scmp.eq.s32.totalorder %s15, 1
    %p138 = por %p136, %p137
    %p139 = scmp.ne.s32.totalorder %s128, %s129
    %p140 = scmp.eq.s32.totalorder %s15, 0
    %p141 = por %p139, %p140
    %p142 = scmp.ne.s32.totalorder %s128, %s129
    %p143 = scmp.eq.s32.totalorder %s16, 1
    %p144 = por %p142, %p143
    %p146 = scmp.ne.s32.totalorder %s129, %s145
    %p147 = scmp.eq.s32.totalorder %s16, 0
    %p148 = por %p146, %p147
    %p149 = scmp.le.s32.totalorder 1, %s10
    %p150 = scmp.lt.s32.totalorder %s10, 3
    %p151 = pnand %p149, %p150
    %p152 = pneg %p151
    // Predicated region
    $region9: #{conv4x4_lrelu.3} parent=5 // pred_check
      _
    $region10: #{conv4x4_lrelu.3} parent=5 // pred_check_branch
      %154 = sbr.rel (%p151) target = $region12
    $region11: #{conv4x4_lrelu.3} parent=5 // pred_region
      %s155 = ssub.s32 %s10, 1
      // Predicated region
      $region13: #{conv4x4_lrelu.3} parent=11 // pred_check
        %p156 = pneg %p71
      $region14: #{conv4x4_lrelu.3} parent=11 // pred_check_branch
        %158 = sbr.rel (%p156) target = $region16
      $region15: #{conv4x4_lrelu.3} parent=11 // pred_region
        _
      $region16: #{conv4x4_lrelu.3} parent=11 // pred_fallthru
        _
      // Predicated region
      $region17: #{conv4x4_lrelu.3} parent=11 // pred_check
        %p159 = pneg %p92
      $region18: #{conv4x4_lrelu.3} parent=11 // pred_check_branch
        %161 = sbr.rel (%p159) target = $region20
      $region19: #{conv4x4_lrelu.3} parent=11 // pred_region
        _
      $region20: #{conv4x4_lrelu.3} parent=11 // pred_fallthru
        _
      // Predicated region
      $region21: #{conv4x4_lrelu.3} parent=11 // pred_check
        %p162 = pneg %p113
      $region22: #{conv4x4_lrelu.3} parent=11 // pred_check_branch
        %164 = sbr.rel (%p162) target = $region24
      $region23: #{conv4x4_lrelu.3} parent=11 // pred_region
        _
      $region24: #{conv4x4_lrelu.3} parent=11 // pred_fallthru
        _
    $region12: #{conv4x4_lrelu.3} parent=5 // pred_fallthru
      _
    %p165 = scmp.lt.s32.totalorder %s10, 2
    // Predicated region
    $region25: #{conv4x4_lrelu.3} parent=5 // pred_check
      %p166 = pneg %p165
    $region26: #{conv4x4_lrelu.3} parent=5 // pred_check_branch
      %168 = sbr.rel (%p166) target = $region28
    $region27: #{conv4x4_lrelu.3} parent=5 // pred_region
      // Predicated region
      $region29: #{conv4x4_lrelu.3} parent=27 // pred_check
        %p169 = pneg %p44
      $region30: #{conv4x4_lrelu.3} parent=27 // pred_check_branch
        %171 = sbr.rel (%p169) target = $region32
      $region31: #{conv4x4_lrelu.3} parent=27 // pred_region
        %p172 = scmp.lt.s32.totalorder %s17, 1
        %s173 = scalar_select %p172, %s17, 1
        %p174 = scmp.lt.s32.totalorder %s18, 0
        %s175 = scalar_select %p174, %s18, 0
        %s176 = smul.addr %s173, 8
        %s177 = sadd.s32 %s175, %s176
        %s178 = smul.addr %s177, 4
        %s179 = scalar_lea.vmem %s0, %s178
      $region32: #{conv4x4_lrelu.3} parent=27 // pred_fallthru
        _
    $region28: #{conv4x4_lrelu.3} parent=5 // pred_fallthru
      _
    %p180 = scmp.le.s32.totalorder 1, %s10
    %p181 = scmp.lt.s32.totalorder %s10, 3
    %p182 = pnand %p180, %p181
    %p183 = pneg %p182
    // Predicated region
    $region33: #{conv4x4_lrelu.3} parent=5 // pred_check
      _
    $region34: #{conv4x4_lrelu.3} parent=5 // pred_check_branch
      %185 = sbr.rel (%p182) target = $region36
    $region35: #{conv4x4_lrelu.3} parent=5 // pred_region
      %s186 = ssub.s32 %s10, 1
      %p187 = scmp.lt.s32.totalorder %s19, 1
      %s188 = scalar_select %p187, %s19, 1
      %p189 = scmp.lt.s32.totalorder %s20, 0
      %s190 = scalar_select %p189, %s20, 0
      %s191 = smul.addr %s188, 8
      %s192 = sadd.s32 %s190, %s191
      %s193 = smul.addr %s192, 4
      %s194 = scalar_lea.vmem %s0, %s193
      %p195 = pneg %p50
      %p196 = pneg %p47
      %p197 = pneg %p71
      %p198 = pneg %p68
      %p199 = pneg %p92
      %p200 = pneg %p89
      %p201 = pneg %p113
      %p202 = pneg %p110
      %p203 = pneg %p141
      %p204 = pneg %p138
      %p205 = scmp.lt.s32.totalorder %s19, 1
      %s206 = scalar_select %p205, %s19, 1
      %p207 = scmp.lt.s32.totalorder %s20, 0
      %s208 = scalar_select %p207, %s20, 0
      %s209 = sadd.s32 %s208, %s206
      %s210 = smul.addr %s209, 8
      %s211 = scalar_lea.vmem %s4, %s210
      %p212 = scmp.lt.s32.totalorder %s19, 1
      %s213 = scalar_select %p212, %s19, 1
      %p214 = scmp.lt.s32.totalorder %s20, 0
      %s215 = scalar_select %p214, %s20, 0
      %s216 = smul.addr %s213, 8
      %s217 = sadd.s32 %s215, %s216
      %s218 = smul.addr %s217, 4
      %s219 = scalar_lea.vmem %s0, %s218
      %p220 = scmp.lt.s32.totalorder %s19, 1
      %s221 = scalar_select %p220, %s19, 1
      %p222 = scmp.lt.s32.totalorder %s20, 0
      %s223 = scalar_select %p222, %s20, 0
      %s224 = sadd.s32 %s223, %s221
      %s225 = smul.addr %s224, 8
      %s226 = scalar_lea.vmem %s4, %s225
      %v228 = vld [vmem:[%s1] sm:$0xf]
      %v229 = vld [vmem:[%s219] sm:$0xf]
      %v230 = vld [vmem:[%s219 + $0x4] sm:$0xf]
      %v231 = vld [vmem:[%s219 + $0x8] sm:$0xf]
      %v232 = vld [vmem:[%s219 + $0xc] sm:$0xf]
      %v233 = vld [vmem:[%s219 + $0x10] sm:$0xf]
      %v234 = vld [vmem:[%s219 + $0x14] sm:$0xf]
      %v235 = vld [vmem:[%s219 + $0x18] sm:$0xf]
      %v236 = vld [vmem:[%s219 + $0x1c] sm:$0xf]
      %v245 = vunpack.c.l.b16 %v229
      %v246 = vunpack.c.l.b16 %v230
      %v247 = vunpack.c.l.b16 %v231
      %v248 = vunpack.c.l.b16 %v232
      %v249 = vunpack.c.l.b16 %v233
      %v250 = vunpack.c.l.b16 %v234
      %v251 = vunpack.c.l.b16 %v235
      %v252 = vunpack.c.l.b16 %v236
      %v253 = vpack.c.b16 %v246, %v245
      %v254 = vpack.c.b16 %v248, %v247
      %v255 = vpack.c.b16 %v250, %v249
      %v256 = vpack.c.b16 %v252, %v251
      %vm261 = vcmask 523264
      %v263 = vsel %vm261, %v228, 0
      %265 = vmatprep.subr.bf16.mxu0 0
      %266 = vmatpush1.bf16.msra.mxu0 %v253
      %267 = vmatprep.subr.bf16.mxu0 0
      %268 = vmatpush1.bf16.msra.mxu0 %v254
      %269 = vmatprep.subr.bf16.mxu0 0
      %270 = vmatpush1.bf16.msra.mxu0 %v255
      %271 = vmatprep.subr.bf16.mxu0 0
      %272 = vmatpush1.bf16.msra.mxu0 %v256
      %273 = vmatprep.subr.bf16.mxu0 0
      %274 = vmatpush1.bf16.msra.mxu0 0
      %275 = vmatprep.subr.bf16.mxu0 0
      %276 = vmatpush1.bf16.msra.mxu0 0
      %277 = vmatprep.subr.bf16.mxu0 0
      %278 = vmatpush1.bf16.msra.mxu0 0
      %279 = vmatprep.subr.bf16.mxu0 0
      %280 = vmatpush1.bf16.msra.mxu0 0
      %281 = vmatprep.subr.bf16.mxu0 0
      %282 = vmatpush1.bf16.msra.mxu0 0
      %283 = vmatprep.subr.bf16.mxu0 0
      %284 = vmatpush1.bf16.msra.mxu0 0
      %285 = vmatprep.subr.bf16.mxu0 0
      %286 = vmatpush1.bf16.msra.mxu0 0
      %287 = vmatprep.subr.bf16.mxu0 0
      %288 = vmatpush1.bf16.msra.mxu0 0
      %289 = vmatprep.subr.bf16.mxu0 0
      %290 = vmatpush1.bf16.msra.mxu0 0
      %291 = vmatprep.subr.bf16.mxu0 0
      %292 = vmatpush1.bf16.msra.mxu0 0
      %293 = vmatprep.subr.bf16.mxu0 0
      %294 = vmatpush1.bf16.msra.mxu0 0
      %295 = vmatprep.subr.bf16.mxu0 0
      %296 = vmatpush1.bf16.msra.mxu0 0
      %297 = vmatprep.mubr.bf16.mxu0 0
      %298 = vmatmul.mubr.bf16.gmra.mrb[0].mxu0 %v263
      %v299 = vpop.f32.mrb[0].mxu0
      %v300 = vadd.f32 0.0, %v299
      %v301 = vpop.f32.mrb[0].mxu0
      %v302 = vpop.f32.mrb[0].mxu0
      %v303 = vpop.f32.mrb[0].mxu0
      %304 = vdwg.mxu0
      %v305 = vld [vmem:[%s2] sm:$0xff]
      %307 = vset.pattern.permute.xlu0 0
      %308 = vperm.xlu0 %307, %v305
      %v309 = vpop.permute.xlu0 %308
      %v311 = vmul.f32 %v300, %v309
      %v312 = vld [vmem:[%s3] sm:$0xff]
      %314 = vset.pattern.permute.xlu0 0
      %315 = vperm.xlu0 %314, %v312
      %v316 = vpop.permute.xlu0 %315
      %v318 = vadd.f32 %v311, %v316
      %vm319 = vcmp.ge.f32.partialorder %v318, 0.0
      %v320 = vmul.f32 %v318, 0.2
      %v321 = vsel %vm319, %v318, %v320
      %322 = vst.msk [vmem:[%s226] sm:$0xff] %vm261, %v321
      %p323 = scmp.lt.s32.totalorder %s19, 1
      %s324 = scalar_select %p323, %s19, 1
      %p325 = scmp.lt.s32.totalorder %s20, 0
      %s326 = scalar_select %p325, %s20, 0
      %s327 = sadd.s32 %s326, %s324
      %s328 = smul.addr %s327, 8
      %s329 = scalar_lea.vmem %s4, %s328
      // Predicated region
      $region37: #{conv4x4_lrelu.3} parent=35 // pred_check
        %p330 = pneg %p138
      $region38: #{conv4x4_lrelu.3} parent=35 // pred_check_branch
        %332 = sbr.rel (%p330) target = $region40
      $region39: #{conv4x4_lrelu.3} parent=35 // pred_region
        _
      $region40: #{conv4x4_lrelu.3} parent=35 // pred_fallthru
        _
    $region36: #{conv4x4_lrelu.3} parent=5 // pred_fallthru
      _
    %p333 = scmp.le.s32.totalorder 2, %s10
    // Predicated region
    $region41: #{conv4x4_lrelu.3} parent=5 // pred_check
      %p334 = pneg %p333
    $region42: #{conv4x4_lrelu.3} parent=5 // pred_check_branch
      %336 = sbr.rel (%p334) target = $region44
    $region43: #{conv4x4_lrelu.3} parent=5 // pred_region
      %s337 = ssub.s32 %s10, 2
      // Predicated region
      $region45: #{conv4x4_lrelu.3} parent=43 // pred_check
        %p338 = pneg %p144
      $region46: #{conv4x4_lrelu.3} parent=43 // pred_check_branch
        %340 = sbr.rel (%p338) target = $region48
      $region47: #{conv4x4_lrelu.3} parent=43 // pred_region
        %p341 = scmp.lt.s32.totalorder %s21, 1
        %s342 = scalar_select %p341, %s21, 1
        %p343 = scmp.lt.s32.totalorder %s22, 0
        %s344 = scalar_select %p343, %s22, 0
        %s345 = sadd.s32 %s344, %s342
        %s346 = smul.addr %s345, 8
        %s347 = scalar_lea.vmem %s4, %s346
      $region48: #{conv4x4_lrelu.3} parent=43 // pred_fallthru
        _
    $region44: #{conv4x4_lrelu.3} parent=5 // pred_fallthru
      _
  $region6: #{conv4x4_lrelu.3} parent=0 // loop_footer
    %s14 = sadd.s32 1, %s10
  $region7: #{conv4x4_lrelu.3} parent=0 // loop_footer_branch
    %9 = sbr.rel target = $region3
  $region8: #{conv4x4_lrelu.3} parent=0 // loop_exit
    _

</llo_original>
